<compile_context>
chip_gen: v6e
topology: v6e:2x2x1
jax: 0.10.0
libtpu: 0.0.40
codegen_flags: <defaults>
</compile_context>

<pallas_src>
import functools

import jax
import jax.numpy as jnp
from jax.experimental import pallas as pl
from jax.experimental.pallas import tpu as pltpu

ATOM_FEATS = [7, 5, 4, 4, 2, 2, 4, 3, 8]
NUM_CAT = len(ATOM_FEATS) - 1                 # 8 categorical features
CAT_DIM = sum(ATOM_FEATS[:-1])                # 31 one-hot columns
CONT_DIM = ATOM_FEATS[-1]                     # 8 continuous columns
FEAT_DIM = CAT_DIM + CONT_DIM                 # 39 == sum(atom_feats)
CONT_START = 32                               # aligned lane start for cont. cols
FEAT_PAD = 128                                # lane-padded contraction (K) dim
HID_PAD = 128                                 # lane-padded matmul output dim
OFFSETS = [0]
for _s in ATOM_FEATS[:-2]:
    OFFSETS.append(OFFSETS[-1] + _s)          # [0,7,12,16,20,22,24,28]


def _network_kernel(xcat_ref, xcont_ref, adj_ref, dinv_ref, w_ref, b_ref,
                    o_ref, *, gb, n, hidden, alpha):
    m = gb * n

    # ---- FeatureEmbedding: identity embeddings == one-hot (VPU, f32) --------
    # Per-feature one-hot offsets were pre-added in the wrapper, so each
    # categorical feature is a bare lane compare.  Continuous columns are
    # dropped into the aligned lanes [CONT_START, CONT_START+8) with lane
    # selects; the weight rows are permuted in the wrapper to match, so no
    # padded feature tensor is ever materialized in HBM.
    col = jax.lax.broadcasted_iota(jnp.int32, (m, FEAT_PAD), 1)
    xcat = xcat_ref[...].reshape(m, NUM_CAT)                      # int32
    feat = jnp.zeros((m, FEAT_PAD), jnp.float32)
    for i in range(NUM_CAT):                                      # static unroll
        feat = feat + (col == xcat[:, i:i + 1]).astype(jnp.float32)
    xcont = xcont_ref[...].reshape(m, CONT_DIM)                   # f32
    for j in range(CONT_DIM):                                     # static unroll
        feat = feat + jnp.where(col == CONT_START + j, xcont[:, j:j + 1], 0.0)

    # ---- fused linear: (GB*N, 128) @ (128, 128), bf16 MXU operands ----------
    xw = jnp.dot(feat.astype(jnp.bfloat16), w_ref[...],
                 preferred_element_type=jnp.float32)[:, :hidden]  # (m, hidden)

    # ---- GCN aggregation with vector scaling ---------------------------------
    #   D^-1/2 (A+I) D^-1/2 X W  ==  d * ((A+I) @ (d * XW)),  d = rsqrt(deg)
    # d is precomputed in the wrapper from the edge list; the adjacency is
    # symmetric with self-loops by construction.  The scaled activation stays
    # in f32 (bf16 here costs ~1e-2 relative accuracy); the small exact bf16
    # adjacency is upcast for the batched contraction.
    dinv = dinv_ref[...]                                          # (gb, n, 1) f32
    xw_s = (dinv.reshape(m, 1) * xw).reshape(gb, n, hidden)
    a = adj_ref[...].astype(jnp.float32)                          # (gb, n, n)
    agg = jnp.einsum('bmn,bnh->bmh', a, xw_s,
                     preferred_element_type=jnp.float32)          # (gb, n, hidden)
    h = dinv * agg + b_ref[...]

    # ---- LeakyReLU(alpha) -----------------------------------------------------
    o_ref[...] = jnp.where(h > 0, h, alpha * h)


def network_forward(x, edge_index, w, b, *, hidden, alpha=0.2):
    """Batched forward.

    x:          (G, N, 16)  8 categorical index columns (stored as float) + 8
                continuous columns.
    edge_index: (G, 2, E)   undirected (mirrored) edges without self-loops.
    w, b:       (39, hidden), (hidden,)  GCN linear parameters.
    Returns     (G, N, hidden) float32.
    """
    g, n, _ = x.shape

    # Categorical indices with per-feature one-hot offsets pre-added.
    x_cat = (x[..., :NUM_CAT].astype(jnp.int32)
             + jnp.asarray(OFFSETS, jnp.int32))                   # (G, N, 8)
    x_cont = x[..., NUM_CAT:].astype(jnp.float32)                 # (G, N, 8)

    # Glue: dense symmetric adjacency with self-loops built directly in bf16
    # (exact for 0/1/small counts; duplicate-edge multiplicities > 256 would
    # round -- not expected for molecular graphs).  Edge scatter has no clean
    # tiled Pallas form at this scale.
    # NOTE: assumes edge_index carries both directions and no (i, i) edges.
    def _dense_adj(ei):
        a = jnp.zeros((n, n), jnp.bfloat16).at[ei[0], ei[1]].add(1.0)
        return a + jnp.eye(n, dtype=jnp.bfloat16)

    adj = jax.vmap(_dense_adj)(edge_index)                        # (G, N, N) bf16

    # d = rsqrt(degree) from the edge list (out-edge count + self-loop), so the
    # kernel skips the N^2 upcast and the cross-lane row reduction.
    def _deg(ei):
        return jnp.zeros((n,), jnp.float32).at[ei[0]].add(1.0) + 1.0

    dinv = jax.lax.rsqrt(jax.vmap(_deg)(edge_index))[..., None]   # (G, N, 1)

    # Weight: bf16, zero-padded to a lane-dense (128, 128) tile; continuous
    # rows moved to the aligned lanes the kernel uses (32..39).
    w_bf = w.astype(jnp.bfloat16)
    w_pad = jnp.zeros((FEAT_PAD, HID_PAD), jnp.bfloat16)
    w_pad = w_pad.at[:CAT_DIM, :hidden].set(w_bf[:CAT_DIM])
    w_pad = w_pad.at[CONT_START:CONT_START + CONT_DIM, :hidden].set(
        w_bf[CAT_DIM:FEAT_DIM])
    b2 = b.astype(jnp.float32).reshape(1, hidden)

    # Graphs per grid step: amortize fixed step overhead and fill MXU rows while
    # keeping the double-buffered per-step I/O around <= 8 MiB (safe on v7x's
    # 64 MiB VMEM; v5e/v6e have 128 MiB).  vmem_limit_bytes raised explicitly
    # because v5e's default scoped limit is only 16 MiB.
    per_graph_io = (4 * n * NUM_CAT + 4 * n * CONT_DIM + 2 * n * n + 4 * n
                    + 4 * n * hidden)
    gb = int(max(1, min(g, (8 << 20) // (2 * per_graph_io))))
    n_blocks = pl.cdiv(g, gb)
    g_pad = n_blocks * gb
    if g_pad != g:                                 # pad to a whole number of blocks
        padn = g_pad - g
        pad3 = lambda a: jnp.pad(a, ((0, padn), (0, 0), (0, 0)))
        x_cat, x_cont, adj = pad3(x_cat), pad3(x_cont), pad3(adj)
        dinv = jnp.pad(dinv, ((0, padn), (0, 0), (0, 0)), constant_values=1.0)

    kernel = functools.partial(_network_kernel, gb=gb, n=n, hidden=hidden,
                               alpha=alpha)

    flops = g_pad * (2 * n * FEAT_PAD * HID_PAD + 2 * n * n * hidden)
    bytes_accessed = (g_pad * per_graph_io
                      + 2 * FEAT_PAD * HID_PAD + 4 * hidden)

    out = pl.pallas_call(
        kernel,
        out_shape=jax.ShapeDtypeStruct((g_pad, n, hidden), jnp.float32),
        grid=(n_blocks,),
        in_specs=[
            pl.BlockSpec((gb, n, NUM_CAT), lambda i: (i, 0, 0)),   # x_cat (i32)
            pl.BlockSpec((gb, n, CONT_DIM), lambda i: (i, 0, 0)),  # x_cont (f32)
            pl.BlockSpec((gb, n, n), lambda i: (i, 0, 0)),         # adjacency (bf16)
            pl.BlockSpec((gb, n, 1), lambda i: (i, 0, 0)),         # rsqrt(degree)
            pl.BlockSpec((FEAT_PAD, HID_PAD), lambda i: (0, 0)),   # weight (bf16)
            pl.BlockSpec((1, hidden), lambda i: (0, 0)),           # bias (f32)
        ],
        out_specs=pl.BlockSpec((gb, n, hidden), lambda i: (i, 0, 0)),
        compiler_params=pltpu.CompilerParams(
            dimension_semantics=("parallel",),
            vmem_limit_bytes=40 * 1024 * 1024),
        cost_estimate=pl.CostEstimate(
            flops=flops, transcendentals=0, bytes_accessed=bytes_accessed),
    )(x_cat, x_cont, adj, dinv, w_pad, b2)

    return out[:g]


def _reference(x, edge_index, w, b, *, hidden, alpha):
    """Pure-JAX f32 reference of the same forward pass (per-graph, vmapped)."""
    def one(xg, eig):
        n = xg.shape[0]
        parts = [jax.nn.one_hot(xg[:, i].astype(jnp.int32), ATOM_FEATS[i],
                                dtype=jnp.float32) for i in range(NUM_CAT)]
        parts.append(xg[:, -CONT_DIM:].astype(jnp.float32))
        feat = jnp.concatenate(parts, axis=1)                     # (N, 39)
        a = jnp.zeros((n, n), jnp.float32).at[eig[0], eig[1]].add(1.0)
        a = a + jnp.eye(n, dtype=jnp.float32)
        d = jax.lax.rsqrt(jnp.maximum(a.sum(1, keepdims=True), 1e-12))
        h = (d * a * d.T) @ (feat @ w) + b
        return jnp.where(h > 0, h, alpha * h)

    return jax.vmap(one)(x, edge_index)


if __name__ == "__main__":
    G, N, HIDDEN, ALPHA = 4, 8, 32, 0.2

    key = jax.random.PRNGKey(0)
    kc, kx, kw = jax.random.split(key, 3)

    # inputs.x : (G, N, 16) — 8 categorical index columns stored as float + 8 cont.
    cat_keys = jax.random.split(kc, NUM_CAT)
    cat_cols = [jax.random.randint(cat_keys[i], (G, N), 0, ATOM_FEATS[i])
                for i in range(NUM_CAT)]
    x_cat = jnp.stack(cat_cols, axis=-1).astype(jnp.float32)
    x_cont = jax.random.normal(kx, (G, N, CONT_DIM), jnp.float32)
    x = jnp.concatenate([x_cat, x_cont], axis=-1)

    # inputs.edge_index : (G, 2, 2N) — undirected ring per graph, no self-loops.
    src = jnp.arange(N)
    dst = (src + 1) % N
    ei = jnp.stack([jnp.concatenate([src, dst]),
                    jnp.concatenate([dst, src])]).astype(jnp.int32)
    edge_index = jnp.broadcast_to(ei, (G, 2, 2 * N))
    # inputs.batch / inputs.edge_attr are accepted by Network.forward but unused.

    # Deterministic parameters of the GCN linear layer (39 -> hidden).
    w = jax.random.normal(kw, (FEAT_DIM, HIDDEN), jnp.float32) * 0.1
    b = jnp.zeros((HIDDEN,), jnp.float32)

    out = network_forward(x, edge_index, w, b, hidden=HIDDEN, alpha=ALPHA)
    jax.block_until_ready(out)
    assert out.shape == (G, N, HIDDEN) and out.dtype == jnp.float32

    ref = _reference(x, edge_index, w, b, hidden=HIDDEN, alpha=ALPHA)
    max_err = float(jnp.max(jnp.abs(out - ref)))
    assert jnp.allclose(out, ref, atol=2e-2, rtol=2e-2), max_err
    print("KERNEL_OK")
</pallas_src>

<mosaic_0001>
module attributes {stable_mosaic.version = 11 : i64} {
  func.func @_network_kernel(%arg0: i32, %arg1: memref<4x8x8xi32, #tpu.memory_space<vmem>>, %arg2: memref<4x8x8xf32, #tpu.memory_space<vmem>>, %arg3: memref<4x8x8xbf16, #tpu.memory_space<vmem>>, %arg4: memref<4x8x1xf32, #tpu.memory_space<vmem>>, %arg5: memref<128x128xbf16, #tpu.memory_space<vmem>>, %arg6: memref<1x32xf32, #tpu.memory_space<vmem>>, %arg7: memref<4x8x32xf32, #tpu.memory_space<vmem>>) attributes {dimension_semantics = [#tpu.dimension_semantics<parallel>], iteration_bounds = array<i64: 1>, scalar_prefetch = 0 : i64, scratch_operands = 0 : i64, tpu.core_type = #tpu.core_type<tc>, window_params = [{transform_indices = @transform_0, window_bounds = array<i64: 4, 8, 8>}, {transform_indices = @transform_1, window_bounds = array<i64: 4, 8, 8>}, {transform_indices = @transform_2, window_bounds = array<i64: 4, 8, 8>}, {transform_indices = @transform_3, window_bounds = array<i64: 4, 8, 1>}, {pipeline_mode = #tpu.pipeline_mode<synchronous>, transform_indices = @transform_4, window_bounds = array<i64: 128, 128>}, {pipeline_mode = #tpu.pipeline_mode<synchronous>, transform_indices = @transform_5, window_bounds = array<i64: 1, 32>}, {transform_indices = @transform_6, window_bounds = array<i64: 4, 8, 32>}]} {
    %0 = tpu.iota {dimensions = array<i32: 1>} : vector<32x128xi32>
    %c0 = arith.constant 0 : index
    %c0_0 = arith.constant 0 : index
    %c0_1 = arith.constant 0 : index
    %1 = vector.load %arg1[%c0, %c0_0, %c0_1] : memref<4x8x8xi32, #tpu.memory_space<vmem>>, vector<4x8x8xi32>
    %2 = vector.shape_cast %1 : vector<4x8x8xi32> to vector<32x8xi32>
    %cst = arith.constant 0.000000e+00 : f32
    %3 = vector.broadcast %cst : f32 to vector<32x128xf32>
    %4 = vector.extract_strided_slice %2 {offsets = [0, 0], sizes = [32, 1], strides = [1, 1]} : vector<32x8xi32> to vector<32x1xi32>
    %5 = vector.broadcast %4 : vector<32x1xi32> to vector<32x128xi32>
    %6 = arith.cmpi eq, %0, %5 : vector<32x128xi32>
    %7 = arith.extui %6 : vector<32x128xi1> to vector<32x128xi32>
    %8 = arith.sitofp %7 : vector<32x128xi32> to vector<32x128xf32>
    %9 = arith.addf %3, %8 : vector<32x128xf32>
    %10 = vector.extract_strided_slice %2 {offsets = [0, 1], sizes = [32, 1], strides = [1, 1]} : vector<32x8xi32> to vector<32x1xi32>
    %11 = vector.broadcast %10 : vector<32x1xi32> to vector<32x128xi32>
    %12 = arith.cmpi eq, %0, %11 : vector<32x128xi32>
    %13 = arith.extui %12 : vector<32x128xi1> to vector<32x128xi32>
    %14 = arith.sitofp %13 : vector<32x128xi32> to vector<32x128xf32>
    %15 = arith.addf %9, %14 : vector<32x128xf32>
    %16 = vector.extract_strided_slice %2 {offsets = [0, 2], sizes = [32, 1], strides = [1, 1]} : vector<32x8xi32> to vector<32x1xi32>
    %17 = vector.broadcast %16 : vector<32x1xi32> to vector<32x128xi32>
    %18 = arith.cmpi eq, %0, %17 : vector<32x128xi32>
    %19 = arith.extui %18 : vector<32x128xi1> to vector<32x128xi32>
    %20 = arith.sitofp %19 : vector<32x128xi32> to vector<32x128xf32>
    %21 = arith.addf %15, %20 : vector<32x128xf32>
    %22 = vector.extract_strided_slice %2 {offsets = [0, 3], sizes = [32, 1], strides = [1, 1]} : vector<32x8xi32> to vector<32x1xi32>
    %23 = vector.broadcast %22 : vector<32x1xi32> to vector<32x128xi32>
    %24 = arith.cmpi eq, %0, %23 : vector<32x128xi32>
    %25 = arith.extui %24 : vector<32x128xi1> to vector<32x128xi32>
    %26 = arith.sitofp %25 : vector<32x128xi32> to vector<32x128xf32>
    %27 = arith.addf %21, %26 : vector<32x128xf32>
    %28 = vector.extract_strided_slice %2 {offsets = [0, 4], sizes = [32, 1], strides = [1, 1]} : vector<32x8xi32> to vector<32x1xi32>
    %29 = vector.broadcast %28 : vector<32x1xi32> to vector<32x128xi32>
    %30 = arith.cmpi eq, %0, %29 : vector<32x128xi32>
    %31 = arith.extui %30 : vector<32x128xi1> to vector<32x128xi32>
    %32 = arith.sitofp %31 : vector<32x128xi32> to vector<32x128xf32>
    %33 = arith.addf %27, %32 : vector<32x128xf32>
    %34 = vector.extract_strided_slice %2 {offsets = [0, 5], sizes = [32, 1], strides = [1, 1]} : vector<32x8xi32> to vector<32x1xi32>
    %35 = vector.broadcast %34 : vector<32x1xi32> to vector<32x128xi32>
    %36 = arith.cmpi eq, %0, %35 : vector<32x128xi32>
    %37 = arith.extui %36 : vector<32x128xi1> to vector<32x128xi32>
    %38 = arith.sitofp %37 : vector<32x128xi32> to vector<32x128xf32>
    %39 = arith.addf %33, %38 : vector<32x128xf32>
    %40 = vector.extract_strided_slice %2 {offsets = [0, 6], sizes = [32, 1], strides = [1, 1]} : vector<32x8xi32> to vector<32x1xi32>
    %41 = vector.broadcast %40 : vector<32x1xi32> to vector<32x128xi32>
    %42 = arith.cmpi eq, %0, %41 : vector<32x128xi32>
    %43 = arith.extui %42 : vector<32x128xi1> to vector<32x128xi32>
    %44 = arith.sitofp %43 : vector<32x128xi32> to vector<32x128xf32>
    %45 = arith.addf %39, %44 : vector<32x128xf32>
    %46 = vector.extract_strided_slice %2 {offsets = [0, 7], sizes = [32, 1], strides = [1, 1]} : vector<32x8xi32> to vector<32x1xi32>
    %47 = vector.broadcast %46 : vector<32x1xi32> to vector<32x128xi32>
    %48 = arith.cmpi eq, %0, %47 : vector<32x128xi32>
    %49 = arith.extui %48 : vector<32x128xi1> to vector<32x128xi32>
    %50 = arith.sitofp %49 : vector<32x128xi32> to vector<32x128xf32>
    %51 = arith.addf %45, %50 : vector<32x128xf32>
    %c0_2 = arith.constant 0 : index
    %c0_3 = arith.constant 0 : index
    %c0_4 = arith.constant 0 : index
    %52 = vector.load %arg2[%c0_2, %c0_3, %c0_4] : memref<4x8x8xf32, #tpu.memory_space<vmem>>, vector<4x8x8xf32>
    %53 = vector.shape_cast %52 : vector<4x8x8xf32> to vector<32x8xf32>
    %c32_i32 = arith.constant 32 : i32
    %54 = vector.broadcast %c32_i32 : i32 to vector<32x128xi32>
    %55 = arith.cmpi eq, %0, %54 : vector<32x128xi32>
    %56 = vector.extract_strided_slice %53 {offsets = [0, 0], sizes = [32, 1], strides = [1, 1]} : vector<32x8xf32> to vector<32x1xf32>
    %cst_5 = arith.constant 0.000000e+00 : f32
    %57 = vector.shape_cast %56 : vector<32x1xf32> to vector<32x1xf32>
    %58 = vector.broadcast %57 : vector<32x1xf32> to vector<32x128xf32>
    %59 = vector.broadcast %cst_5 : f32 to vector<32x128xf32>
    %60 = arith.select %55, %58, %59 : vector<32x128xi1>, vector<32x128xf32>
    %61 = arith.addf %51, %60 : vector<32x128xf32>
    %c33_i32 = arith.constant 33 : i32
    %62 = vector.broadcast %c33_i32 : i32 to vector<32x128xi32>
    %63 = arith.cmpi eq, %0, %62 : vector<32x128xi32>
    %64 = vector.extract_strided_slice %53 {offsets = [0, 1], sizes = [32, 1], strides = [1, 1]} : vector<32x8xf32> to vector<32x1xf32>
    %cst_6 = arith.constant 0.000000e+00 : f32
    %65 = vector.shape_cast %64 : vector<32x1xf32> to vector<32x1xf32>
    %66 = vector.broadcast %65 : vector<32x1xf32> to vector<32x128xf32>
    %67 = vector.broadcast %cst_6 : f32 to vector<32x128xf32>
    %68 = arith.select %63, %66, %67 : vector<32x128xi1>, vector<32x128xf32>
    %69 = arith.addf %61, %68 : vector<32x128xf32>
    %c34_i32 = arith.constant 34 : i32
    %70 = vector.broadcast %c34_i32 : i32 to vector<32x128xi32>
    %71 = arith.cmpi eq, %0, %70 : vector<32x128xi32>
    %72 = vector.extract_strided_slice %53 {offsets = [0, 2], sizes = [32, 1], strides = [1, 1]} : vector<32x8xf32> to vector<32x1xf32>
    %cst_7 = arith.constant 0.000000e+00 : f32
    %73 = vector.shape_cast %72 : vector<32x1xf32> to vector<32x1xf32>
    %74 = vector.broadcast %73 : vector<32x1xf32> to vector<32x128xf32>
    %75 = vector.broadcast %cst_7 : f32 to vector<32x128xf32>
    %76 = arith.select %71, %74, %75 : vector<32x128xi1>, vector<32x128xf32>
    %77 = arith.addf %69, %76 : vector<32x128xf32>
    %c35_i32 = arith.constant 35 : i32
    %78 = vector.broadcast %c35_i32 : i32 to vector<32x128xi32>
    %79 = arith.cmpi eq, %0, %78 : vector<32x128xi32>
    %80 = vector.extract_strided_slice %53 {offsets = [0, 3], sizes = [32, 1], strides = [1, 1]} : vector<32x8xf32> to vector<32x1xf32>
    %cst_8 = arith.constant 0.000000e+00 : f32
    %81 = vector.shape_cast %80 : vector<32x1xf32> to vector<32x1xf32>
    %82 = vector.broadcast %81 : vector<32x1xf32> to vector<32x128xf32>
    %83 = vector.broadcast %cst_8 : f32 to vector<32x128xf32>
    %84 = arith.select %79, %82, %83 : vector<32x128xi1>, vector<32x128xf32>
    %85 = arith.addf %77, %84 : vector<32x128xf32>
    %c36_i32 = arith.constant 36 : i32
    %86 = vector.broadcast %c36_i32 : i32 to vector<32x128xi32>
    %87 = arith.cmpi eq, %0, %86 : vector<32x128xi32>
    %88 = vector.extract_strided_slice %53 {offsets = [0, 4], sizes = [32, 1], strides = [1, 1]} : vector<32x8xf32> to vector<32x1xf32>
    %cst_9 = arith.constant 0.000000e+00 : f32
    %89 = vector.shape_cast %88 : vector<32x1xf32> to vector<32x1xf32>
    %90 = vector.broadcast %89 : vector<32x1xf32> to vector<32x128xf32>
    %91 = vector.broadcast %cst_9 : f32 to vector<32x128xf32>
    %92 = arith.select %87, %90, %91 : vector<32x128xi1>, vector<32x128xf32>
    %93 = arith.addf %85, %92 : vector<32x128xf32>
    %c37_i32 = arith.constant 37 : i32
    %94 = vector.broadcast %c37_i32 : i32 to vector<32x128xi32>
    %95 = arith.cmpi eq, %0, %94 : vector<32x128xi32>
    %96 = vector.extract_strided_slice %53 {offsets = [0, 5], sizes = [32, 1], strides = [1, 1]} : vector<32x8xf32> to vector<32x1xf32>
    %cst_10 = arith.constant 0.000000e+00 : f32
    %97 = vector.shape_cast %96 : vector<32x1xf32> to vector<32x1xf32>
    %98 = vector.broadcast %97 : vector<32x1xf32> to vector<32x128xf32>
    %99 = vector.broadcast %cst_10 : f32 to vector<32x128xf32>
    %100 = arith.select %95, %98, %99 : vector<32x128xi1>, vector<32x128xf32>
    %101 = arith.addf %93, %100 : vector<32x128xf32>
    %c38_i32 = arith.constant 38 : i32
    %102 = vector.broadcast %c38_i32 : i32 to vector<32x128xi32>
    %103 = arith.cmpi eq, %0, %102 : vector<32x128xi32>
    %104 = vector.extract_strided_slice %53 {offsets = [0, 6], sizes = [32, 1], strides = [1, 1]} : vector<32x8xf32> to vector<32x1xf32>
    %cst_11 = arith.constant 0.000000e+00 : f32
    %105 = vector.shape_cast %104 : vector<32x1xf32> to vector<32x1xf32>
    %106 = vector.broadcast %105 : vector<32x1xf32> to vector<32x128xf32>
    %107 = vector.broadcast %cst_11 : f32 to vector<32x128xf32>
    %108 = arith.select %103, %106, %107 : vector<32x128xi1>, vector<32x128xf32>
    %109 = arith.addf %101, %108 : vector<32x128xf32>
    %c39_i32 = arith.constant 39 : i32
    %110 = vector.broadcast %c39_i32 : i32 to vector<32x128xi32>
    %111 = arith.cmpi eq, %0, %110 : vector<32x128xi32>
    %112 = vector.extract_strided_slice %53 {offsets = [0, 7], sizes = [32, 1], strides = [1, 1]} : vector<32x8xf32> to vector<32x1xf32>
    %cst_12 = arith.constant 0.000000e+00 : f32
    %113 = vector.shape_cast %112 : vector<32x1xf32> to vector<32x1xf32>
    %114 = vector.broadcast %113 : vector<32x1xf32> to vector<32x128xf32>
    %115 = vector.broadcast %cst_12 : f32 to vector<32x128xf32>
    %116 = arith.select %111, %114, %115 : vector<32x128xi1>, vector<32x128xf32>
    %117 = arith.addf %109, %116 : vector<32x128xf32>
    %118 = arith.truncf %117 : vector<32x128xf32> to vector<32x128xbf16>
    %c0_13 = arith.constant 0 : index
    %c0_14 = arith.constant 0 : index
    %119 = vector.load %arg5[%c0_13, %c0_14] : memref<128x128xbf16, #tpu.memory_space<vmem>>, vector<128x128xbf16>
    %cst_15 = arith.constant dense<0.000000e+00> : vector<32x128xf32>
    %120 = tpu.matmul %118, %119, %cst_15 {dimension_numbers = #tpu.dot_dimension_numbers<[1], [0], [0], [1], [0, 0, 1, 1], [], []>} : vector<32x128xbf16>, vector<128x128xbf16>, vector<32x128xf32> -> vector<32x128xf32>
    %121 = vector.extract_strided_slice %120 {offsets = [0, 0], sizes = [32, 32], strides = [1, 1]} : vector<32x128xf32> to vector<32x32xf32>
    %c0_16 = arith.constant 0 : index
    %c0_17 = arith.constant 0 : index
    %c0_18 = arith.constant 0 : index
    %122 = vector.load %arg4[%c0_16, %c0_17, %c0_18] : memref<4x8x1xf32, #tpu.memory_space<vmem>>, vector<4x8x1xf32>
    %123 = vector.shape_cast %122 : vector<4x8x1xf32> to vector<32x1xf32>
    %124 = vector.broadcast %123 : vector<32x1xf32> to vector<32x32xf32>
    %125 = arith.mulf %124, %121 : vector<32x32xf32>
    %126 = vector.shape_cast %125 : vector<32x32xf32> to vector<4x8x32xf32>
    %c0_19 = arith.constant 0 : index
    %c0_20 = arith.constant 0 : index
    %c0_21 = arith.constant 0 : index
    %127 = vector.load %arg3[%c0_19, %c0_20, %c0_21] : memref<4x8x8xbf16, #tpu.memory_space<vmem>>, vector<4x8x8xbf16>
    %128 = arith.extf %127 : vector<4x8x8xbf16> to vector<4x8x8xf32>
    "tpu.trace_start"() <{level = 10 : i32, message = "bmn,bnh->bmh"}> : () -> ()
    %cst_22 = arith.constant dense<0.000000e+00> : vector<4x8x32xf32>
    %129 = tpu.matmul %128, %126, %cst_22 {dimension_numbers = #tpu.dot_dimension_numbers<[2], [1], [1], [2], [0, 0, 0, 1, 1, 2], [0], [0]>} : vector<4x8x8xf32>, vector<4x8x32xf32>, vector<4x8x32xf32> -> vector<4x8x32xf32>
    "tpu.trace_stop"() : () -> ()
    %130 = vector.broadcast %122 : vector<4x8x1xf32> to vector<4x8x32xf32>
    %131 = arith.mulf %130, %129 : vector<4x8x32xf32>
    %c0_23 = arith.constant 0 : index
    %c0_24 = arith.constant 0 : index
    %132 = vector.load %arg6[%c0_23, %c0_24] : memref<1x32xf32, #tpu.memory_space<vmem>>, vector<1x32xf32>
    %133 = vector.shape_cast %132 : vector<1x32xf32> to vector<1x1x32xf32>
    %134 = vector.broadcast %133 : vector<1x1x32xf32> to vector<4x8x32xf32>
    %135 = arith.addf %131, %134 : vector<4x8x32xf32>
    %cst_25 = arith.constant 0.000000e+00 : f32
    %136 = vector.broadcast %cst_25 : f32 to vector<4x8x32xf32>
    %137 = arith.cmpf ogt, %135, %136 : vector<4x8x32xf32>
    %cst_26 = arith.constant 2.000000e-01 : f32
    %138 = vector.broadcast %cst_26 : f32 to vector<4x8x32xf32>
    %139 = arith.mulf %138, %135 : vector<4x8x32xf32>
    %140 = arith.select %137, %135, %139 : vector<4x8x32xi1>, vector<4x8x32xf32>
    %c0_27 = arith.constant 0 : index
    %c0_28 = arith.constant 0 : index
    %c0_29 = arith.constant 0 : index
    %141 = vector.load %arg7[%c0_27, %c0_28, %c0_29] : memref<4x8x32xf32, #tpu.memory_space<vmem>>, vector<4x8x32xf32>
    tpu.vector_store %arg7[%c0_27, %c0_28, %c0_29], %140 {strides = array<i32>} : memref<4x8x32xf32, #tpu.memory_space<vmem>>, vector<4x8x32xf32>,
    return
  }
  func.func @transform_0(%arg0: i32) -> (i32, i32, i32) {
    %c0_i32 = arith.constant 0 : i32
    %c0_i32_0 = arith.constant 0 : i32
    %c0_i32_1 = arith.constant 0 : i32
    return %arg0, %c0_i32, %c0_i32_0 : i32, i32, i32
  }
  func.func @transform_1(%arg0: i32) -> (i32, i32, i32) {
    %c0_i32 = arith.constant 0 : i32
    %c0_i32_0 = arith.constant 0 : i32
    %c0_i32_1 = arith.constant 0 : i32
    return %arg0, %c0_i32, %c0_i32_0 : i32, i32, i32
  }
  func.func @transform_2(%arg0: i32) -> (i32, i32, i32) {
    %c0_i32 = arith.constant 0 : i32
    %c0_i32_0 = arith.constant 0 : i32
    %c0_i32_1 = arith.constant 0 : i32
    return %arg0, %c0_i32, %c0_i32_0 : i32, i32, i32
  }
  func.func @transform_3(%arg0: i32) -> (i32, i32, i32) {
    %c0_i32 = arith.constant 0 : i32
    %c0_i32_0 = arith.constant 0 : i32
    %c0_i32_1 = arith.constant 0 : i32
    return %arg0, %c0_i32, %c0_i32_0 : i32, i32, i32
  }
  func.func @transform_4(%arg0: i32) -> (i32, i32) {
    %c0_i32 = arith.constant 0 : i32
    %c0_i32_0 = arith.constant 0 : i32
    %c0_i32_1 = arith.constant 0 : i32
    return %c0_i32, %c0_i32_0 : i32, i32
  }
  func.func @transform_5(%arg0: i32) -> (i32, i32) {
    %c0_i32 = arith.constant 0 : i32
    %c0_i32_0 = arith.constant 0 : i32
    %c0_i32_1 = arith.constant 0 : i32
    return %c0_i32, %c0_i32_0 : i32, i32
  }
  func.func @transform_6(%arg0: i32) -> (i32, i32, i32) {
    %c0_i32 = arith.constant 0 : i32
    %c0_i32_0 = arith.constant 0 : i32
    %c0_i32_1 = arith.constant 0 : i32
    return %arg0, %c0_i32, %c0_i32_0 : i32, i32, i32
  }
}

</mosaic_0001>

<llo_original>
// kernel: tpu_custom_call.1
$region0: #{tpu_custom_call.1}
  #allocation0 [shape = 'u32[]', space=smem, size = 0x4, offset = 0x4, fixed_abs, tag = 'smem constant byte address 0x4 - core index']
  #allocation1 [shape = 'u32[144,128]{1,0:T(1,128)}', space=vmem, size = 0x12000, scoped, tag = 'internal scratch']
  %s0 = inlined_call_operand.vmem [shape: s32[4,8,8], index: 0, kind: input, shape index: {}]
  %s1 = inlined_call_operand.hbm [shape: f32[4,8,8], index: 1, kind: input, shape index: {}]
  %s2 = inlined_call_operand.hbm [shape: bf16[4,8,8], index: 2, kind: input, shape index: {}]
  %s3 = inlined_call_operand.vmem [shape: f32[4,8,1], index: 3, kind: input, shape index: {}]
  %s4 = inlined_call_operand.hbm [shape: bf16[128,128], index: 4, kind: input, shape index: {}]
  %s5 = inlined_call_operand.vmem [shape: f32[1,32], index: 5, kind: input, shape index: {}]
  %s6 = inlined_call_operand.hbm [shape: f32[4,8,32], index: 6, kind: output, shape index: {}]
  %s7 = sld [smem:[#allocation0]]
  $region46: #{tpu_custom_call.1} parent=0
    _
  %s9 = ssub.s32 1, %s7
  %s10 = scalar_select 0, %s9, %s7
  $region1: #{tpu_custom_call.1} parent=0
    #allocation2 [shape = 'u8[16384]{0}', space=vmem, size = 0x4000, scoped, tag = 'input window, operand 1, single buffered']
    #allocation3 [shape = 's32[1]{0}', space=sflag, size = 0x4, scoped, tag = 'scoped memory for tpu_custom_call.1']
    #allocation4 [shape = 's32[1]{0}', space=sflag, size = 0x4, scoped, tag = 'scoped memory for tpu_custom_call.1']
    #allocation5 [shape = 'u8[8192]{0}', space=vmem, size = 0x2000, scoped, tag = 'input window, operand 2, single buffered']
    #allocation6 [shape = 's32[1]{0}', space=sflag, size = 0x4, scoped, tag = 'scoped memory for tpu_custom_call.1']
    #allocation7 [shape = 'u8[32768]{0}', space=vmem, size = 0x8000, scoped, tag = 'input window, operand 4, single buffered']
    #allocation8 [shape = 'u8[16384]{0}', space=vmem, size = 0x4000, scoped, tag = 'output window, operand 0, single buffered']
    %11 = vsyncpa [#allocation3], 0
    %12 = vsyncpa [#allocation6], 0
    %13 = vsyncpa [#allocation4], 0
    // Predicated region
    $region2: #{tpu_custom_call.1} parent=1 // pred_check
      _
    $region3: #{tpu_custom_call.1} parent=1 // pred_check_branch
      %15 = sbr.rel (0) target = $region5
    $region4: #{tpu_custom_call.1} parent=1 // pred_region
      _
    $region5: #{tpu_custom_call.1} parent=1 // pred_fallthru
      _
    // Predicated region
    $region6: #{tpu_custom_call.1} parent=1 // pred_check
      _
    $region7: #{tpu_custom_call.1} parent=1 // pred_check_branch
      %17 = sbr.rel (0) target = $region9
    $region8: #{tpu_custom_call.1} parent=1 // pred_region
      %s19 = ssub.s32 512, 512
      %20 = vsyncadd [#allocation3], %s19
      %s21 = sshll.u32 [#allocation2], 4
      %s22 = int_to_ptr.vmem [resolvable:$true] %s21
      %27 = dma.hbm_to_vmem [thread:$0]  %s1, 512, %s22, [#allocation3], 128, 128, 8
    $region9: #{tpu_custom_call.1} parent=1 // pred_fallthru
      _
    // Predicated region
    $region10: #{tpu_custom_call.1} parent=1 // pred_check
      _
    $region11: #{tpu_custom_call.1} parent=1 // pred_check_branch
      %29 = sbr.rel (0) target = $region13
    $region12: #{tpu_custom_call.1} parent=1 // pred_region
      %s31 = ssub.s32 256, 256
      %32 = vsyncadd [#allocation6], %s31
      %s33 = sshll.u32 [#allocation5], 4
      %s34 = int_to_ptr.vmem [resolvable:$true] %s33
      %39 = dma.hbm_to_vmem [thread:$0]  %s2, 256, %s34, [#allocation6], 64, 64, 4
    $region13: #{tpu_custom_call.1} parent=1 // pred_fallthru
      _
    // Predicated region
    $region14: #{tpu_custom_call.1} parent=1 // pred_check
      _
    $region15: #{tpu_custom_call.1} parent=1 // pred_check_branch
      %41 = sbr.rel (0) target = $region17
    $region16: #{tpu_custom_call.1} parent=1 // pred_region
      _
    $region17: #{tpu_custom_call.1} parent=1 // pred_fallthru
      _
    // Predicated region
    $region18: #{tpu_custom_call.1} parent=1 // pred_check
      _
    $region19: #{tpu_custom_call.1} parent=1 // pred_check_branch
      %43 = sbr.rel (0) target = $region21
    $region20: #{tpu_custom_call.1} parent=1 // pred_region
      %s45 = ssub.s32 1024, 1024
      %46 = vsyncadd [#allocation6], %s45
      %s47 = sshll.u32 [#allocation7], 4
      %s48 = int_to_ptr.vmem [resolvable:$true] %s47
      %53 = dma.hbm_to_vmem [thread:$0]  %s4, 1024, %s48, [#allocation6], 64, 64, 4
    $region21: #{tpu_custom_call.1} parent=1 // pred_fallthru
      _
    // Predicated region
    $region22: #{tpu_custom_call.1} parent=1 // pred_check
      _
    $region23: #{tpu_custom_call.1} parent=1 // pred_check_branch
      %55 = sbr.rel (0) target = $region25
    $region24: #{tpu_custom_call.1} parent=1 // pred_region
      _
    $region25: #{tpu_custom_call.1} parent=1 // pred_fallthru
      _
    // Predicated region
    $region26: #{tpu_custom_call.1} parent=1 // pred_check
      _
    $region27: #{tpu_custom_call.1} parent=1 // pred_check_branch
      %57 = sbr.rel (0) target = $region29
    $region28: #{tpu_custom_call.1} parent=1 // pred_region
      %58 = dma.done [#allocation3], 512
    $region29: #{tpu_custom_call.1} parent=1 // pred_fallthru
      _
    // Predicated region
    $region30: #{tpu_custom_call.1} parent=1 // pred_check
      _
    $region31: #{tpu_custom_call.1} parent=1 // pred_check_branch
      %60 = sbr.rel (0) target = $region33
    $region32: #{tpu_custom_call.1} parent=1 // pred_region
      %61 = dma.done [#allocation6], 256
    $region33: #{tpu_custom_call.1} parent=1 // pred_fallthru
      _
    // Predicated region
    $region34: #{tpu_custom_call.1} parent=1 // pred_check
      _
    $region35: #{tpu_custom_call.1} parent=1 // pred_check_branch
      %63 = sbr.rel (0) target = $region37
    $region36: #{tpu_custom_call.1} parent=1 // pred_region
      %64 = dma.done [#allocation6], 1024
    $region37: #{tpu_custom_call.1} parent=1 // pred_fallthru
      _
    %v66 = vlaneseq
    %v67 = vand.u32 %v66, 127
    %v68 = vld [vmem:[%s0] sm:$0xff]
    %v69 = vld [vmem:[%s0 + $0x8] sm:$0xff]
    %v70 = vld [vmem:[%s0 + $0x10] sm:$0xff]
    %v71 = vld [vmem:[%s0 + $0x18] sm:$0xff]
    %72 = vset.pattern.permute.xlu0 0
    %73 = vperm.xlu0 %72, %v68
    %v74 = vpop.permute.xlu0 %73
    %75 = vset.pattern.permute.xlu0 0
    %76 = vperm.xlu0 %75, %v69
    %v77 = vpop.permute.xlu0 %76
    %78 = vset.pattern.permute.xlu0 0
    %79 = vperm.xlu0 %78, %v70
    %v80 = vpop.permute.xlu0 %79
    %81 = vset.pattern.permute.xlu0 0
    %82 = vperm.xlu0 %81, %v71
    %v83 = vpop.permute.xlu0 %82
    %vm84 = vcmp.eq.s32.totalorder %v67, %v74
    %vm85 = vcmp.eq.s32.totalorder %v67, %v77
    %vm86 = vcmp.eq.s32.totalorder %v67, %v80
    %vm87 = vcmp.eq.s32.totalorder %v67, %v83
    %v88 = vsel %vm84, 1, 0
    %v89 = vsel %vm85, 1, 0
    %v90 = vsel %vm86, 1, 0
    %v91 = vsel %vm87, 1, 0
    %v92 = vcvt.s32.f32 %v88
    %v93 = vcvt.s32.f32 %v89
    %v94 = vcvt.s32.f32 %v90
    %v95 = vcvt.s32.f32 %v91
    %v96 = vadd.f32 %v92, 0.0
    %v97 = vadd.f32 %v93, 0.0
    %v98 = vadd.f32 %v94, 0.0
    %v99 = vadd.f32 %v95, 0.0
    %100 = vset.pattern.permute.xlu0 1
    %101 = vperm.xlu0 %100, %v68
    %v102 = vpop.permute.xlu0 %101
    %103 = vset.pattern.permute.xlu0 1
    %104 = vperm.xlu0 %103, %v69
    %v105 = vpop.permute.xlu0 %104
    %106 = vset.pattern.permute.xlu0 1
    %107 = vperm.xlu0 %106, %v70
    %v108 = vpop.permute.xlu0 %107
    %109 = vset.pattern.permute.xlu0 1
    %110 = vperm.xlu0 %109, %v71
    %v111 = vpop.permute.xlu0 %110
    %vm112 = vcmp.eq.s32.totalorder %v67, %v102
    %vm113 = vcmp.eq.s32.totalorder %v67, %v105
    %vm114 = vcmp.eq.s32.totalorder %v67, %v108
    %vm115 = vcmp.eq.s32.totalorder %v67, %v111
    %v116 = vsel %vm112, 1, 0
    %v117 = vsel %vm113, 1, 0
    %v118 = vsel %vm114, 1, 0
    %v119 = vsel %vm115, 1, 0
    %v120 = vcvt.s32.f32 %v116
    %v121 = vcvt.s32.f32 %v117
    %v122 = vcvt.s32.f32 %v118
    %v123 = vcvt.s32.f32 %v119
    %v124 = vadd.f32 %v96, %v120
    %v125 = vadd.f32 %v97, %v121
    %v126 = vadd.f32 %v98, %v122
    %v127 = vadd.f32 %v99, %v123
    %128 = vset.pattern.permute.xlu0 2
    %129 = vperm.xlu0 %128, %v68
    %v130 = vpop.permute.xlu0 %129
    %131 = vset.pattern.permute.xlu0 2
    %132 = vperm.xlu0 %131, %v69
    %v133 = vpop.permute.xlu0 %132
    %134 = vset.pattern.permute.xlu0 2
    %135 = vperm.xlu0 %134, %v70
    %v136 = vpop.permute.xlu0 %135
    %137 = vset.pattern.permute.xlu0 2
    %138 = vperm.xlu0 %137, %v71
    %v139 = vpop.permute.xlu0 %138
    %vm140 = vcmp.eq.s32.totalorder %v67, %v130
    %vm141 = vcmp.eq.s32.totalorder %v67, %v133
    %vm142 = vcmp.eq.s32.totalorder %v67, %v136
    %vm143 = vcmp.eq.s32.totalorder %v67, %v139
    %v144 = vsel %vm140, 1, 0
    %v145 = vsel %vm141, 1, 0
    %v146 = vsel %vm142, 1, 0
    %v147 = vsel %vm143, 1, 0
    %v148 = vcvt.s32.f32 %v144
    %v149 = vcvt.s32.f32 %v145
    %v150 = vcvt.s32.f32 %v146
    %v151 = vcvt.s32.f32 %v147
    %v152 = vadd.f32 %v124, %v148
    %v153 = vadd.f32 %v125, %v149
    %v154 = vadd.f32 %v126, %v150
    %v155 = vadd.f32 %v127, %v151
    %156 = vset.pattern.permute.xlu0 3
    %157 = vperm.xlu0 %156, %v68
    %v158 = vpop.permute.xlu0 %157
    %159 = vset.pattern.permute.xlu0 3
    %160 = vperm.xlu0 %159, %v69
    %v161 = vpop.permute.xlu0 %160
    %162 = vset.pattern.permute.xlu0 3
    %163 = vperm.xlu0 %162, %v70
    %v164 = vpop.permute.xlu0 %163
    %165 = vset.pattern.permute.xlu0 3
    %166 = vperm.xlu0 %165, %v71
    %v167 = vpop.permute.xlu0 %166
    %vm168 = vcmp.eq.s32.totalorder %v67, %v158
    %vm169 = vcmp.eq.s32.totalorder %v67, %v161
    %vm170 = vcmp.eq.s32.totalorder %v67, %v164
    %vm171 = vcmp.eq.s32.totalorder %v67, %v167
    %v172 = vsel %vm168, 1, 0
    %v173 = vsel %vm169, 1, 0
    %v174 = vsel %vm170, 1, 0
    %v175 = vsel %vm171, 1, 0
    %v176 = vcvt.s32.f32 %v172
    %v177 = vcvt.s32.f32 %v173
    %v178 = vcvt.s32.f32 %v174
    %v179 = vcvt.s32.f32 %v175
    %v180 = vadd.f32 %v152, %v176
    %v181 = vadd.f32 %v153, %v177
    %v182 = vadd.f32 %v154, %v178
    %v183 = vadd.f32 %v155, %v179
    %184 = vset.pattern.permute.xlu0 4
    %185 = vperm.xlu0 %184, %v68
    %v186 = vpop.permute.xlu0 %185
    %187 = vset.pattern.permute.xlu0 4
    %188 = vperm.xlu0 %187, %v69
    %v189 = vpop.permute.xlu0 %188
    %190 = vset.pattern.permute.xlu0 4
    %191 = vperm.xlu0 %190, %v70
    %v192 = vpop.permute.xlu0 %191
    %193 = vset.pattern.permute.xlu0 4
    %194 = vperm.xlu0 %193, %v71
    %v195 = vpop.permute.xlu0 %194
    %vm196 = vcmp.eq.s32.totalorder %v67, %v186
    %vm197 = vcmp.eq.s32.totalorder %v67, %v189
    %vm198 = vcmp.eq.s32.totalorder %v67, %v192
    %vm199 = vcmp.eq.s32.totalorder %v67, %v195
    %v200 = vsel %vm196, 1, 0
    %v201 = vsel %vm197, 1, 0
    %v202 = vsel %vm198, 1, 0
    %v203 = vsel %vm199, 1, 0
    %v204 = vcvt.s32.f32 %v200
    %v205 = vcvt.s32.f32 %v201
    %v206 = vcvt.s32.f32 %v202
    %v207 = vcvt.s32.f32 %v203
    %v208 = vadd.f32 %v180, %v204
    %v209 = vadd.f32 %v181, %v205
    %v210 = vadd.f32 %v182, %v206
    %v211 = vadd.f32 %v183, %v207
    %212 = vset.pattern.permute.xlu0 5
    %213 = vperm.xlu0 %212, %v68
    %v214 = vpop.permute.xlu0 %213
    %215 = vset.pattern.permute.xlu0 5
    %216 = vperm.xlu0 %215, %v69
    %v217 = vpop.permute.xlu0 %216
    %218 = vset.pattern.permute.xlu0 5
    %219 = vperm.xlu0 %218, %v70
    %v220 = vpop.permute.xlu0 %219
    %221 = vset.pattern.permute.xlu0 5
    %222 = vperm.xlu0 %221, %v71
    %v223 = vpop.permute.xlu0 %222
    %vm224 = vcmp.eq.s32.totalorder %v67, %v214
    %vm225 = vcmp.eq.s32.totalorder %v67, %v217
    %vm226 = vcmp.eq.s32.totalorder %v67, %v220
    %vm227 = vcmp.eq.s32.totalorder %v67, %v223
    %v228 = vsel %vm224, 1, 0
    %v229 = vsel %vm225, 1, 0
    %v230 = vsel %vm226, 1, 0
    %v231 = vsel %vm227, 1, 0
    %v232 = vcvt.s32.f32 %v228
    %v233 = vcvt.s32.f32 %v229
    %v234 = vcvt.s32.f32 %v230
    %v235 = vcvt.s32.f32 %v231
    %v236 = vadd.f32 %v208, %v232
    %v237 = vadd.f32 %v209, %v233
    %v238 = vadd.f32 %v210, %v234
    %v239 = vadd.f32 %v211, %v235
    %240 = vset.pattern.permute.xlu0 6
    %241 = vperm.xlu0 %240, %v68
    %v242 = vpop.permute.xlu0 %241
    %243 = vset.pattern.permute.xlu0 6
    %244 = vperm.xlu0 %243, %v69
    %v245 = vpop.permute.xlu0 %244
    %246 = vset.pattern.permute.xlu0 6
    %247 = vperm.xlu0 %246, %v70
    %v248 = vpop.permute.xlu0 %247
    %249 = vset.pattern.permute.xlu0 6
    %250 = vperm.xlu0 %249, %v71
    %v251 = vpop.permute.xlu0 %250
    %vm252 = vcmp.eq.s32.totalorder %v67, %v242
    %vm253 = vcmp.eq.s32.totalorder %v67, %v245
    %vm254 = vcmp.eq.s32.totalorder %v67, %v248
    %vm255 = vcmp.eq.s32.totalorder %v67, %v251
    %v256 = vsel %vm252, 1, 0
    %v257 = vsel %vm253, 1, 0
    %v258 = vsel %vm254, 1, 0
    %v259 = vsel %vm255, 1, 0
    %v260 = vcvt.s32.f32 %v256
    %v261 = vcvt.s32.f32 %v257
    %v262 = vcvt.s32.f32 %v258
    %v263 = vcvt.s32.f32 %v259
    %v264 = vadd.f32 %v236, %v260
    %v265 = vadd.f32 %v237, %v261
    %v266 = vadd.f32 %v238, %v262
    %v267 = vadd.f32 %v239, %v263
    %268 = vset.pattern.permute.xlu0 7
    %269 = vperm.xlu0 %268, %v68
    %v270 = vpop.permute.xlu0 %269
    %271 = vset.pattern.permute.xlu0 7
    %272 = vperm.xlu0 %271, %v69
    %v273 = vpop.permute.xlu0 %272
    %274 = vset.pattern.permute.xlu0 7
    %275 = vperm.xlu0 %274, %v70
    %v276 = vpop.permute.xlu0 %275
    %277 = vset.pattern.permute.xlu0 7
    %278 = vperm.xlu0 %277, %v71
    %v279 = vpop.permute.xlu0 %278
    %vm280 = vcmp.eq.s32.totalorder %v67, %v270
    %vm281 = vcmp.eq.s32.totalorder %v67, %v273
    %vm282 = vcmp.eq.s32.totalorder %v67, %v276
    %vm283 = vcmp.eq.s32.totalorder %v67, %v279
    %v284 = vsel %vm280, 1, 0
    %v285 = vsel %vm281, 1, 0
    %v286 = vsel %vm282, 1, 0
    %v287 = vsel %vm283, 1, 0
    %v288 = vcvt.s32.f32 %v284
    %v289 = vcvt.s32.f32 %v285
    %v290 = vcvt.s32.f32 %v286
    %v291 = vcvt.s32.f32 %v287
    %v292 = vadd.f32 %v264, %v288
    %v293 = vadd.f32 %v265, %v289
    %v294 = vadd.f32 %v266, %v290
    %v295 = vadd.f32 %v267, %v291
    %v296 = vld [vmem:[#allocation2] sm:$0xff]
    %v297 = vld [vmem:[#allocation2 + $0x8] sm:$0xff]
    %v298 = vld [vmem:[#allocation2 + $0x10] sm:$0xff]
    %v299 = vld [vmem:[#allocation2 + $0x18] sm:$0xff]
    %vm300 = vcmp.eq.s32.totalorder %v67, 32
    %302 = vset.pattern.permute.xlu0 0
    %303 = vperm.xlu0 %302, %v296
    %v304 = vpop.permute.xlu0 %303
    %307 = vset.pattern.permute.xlu0 0
    %308 = vperm.xlu0 %307, %v297
    %v309 = vpop.permute.xlu0 %308
    %312 = vset.pattern.permute.xlu0 0
    %313 = vperm.xlu0 %312, %v298
    %v314 = vpop.permute.xlu0 %313
    %317 = vset.pattern.permute.xlu0 0
    %318 = vperm.xlu0 %317, %v299
    %v319 = vpop.permute.xlu0 %318
    %v321 = vsel %vm300, %v304, 0.0
    %v322 = vsel %vm300, %v309, 0.0
    %v323 = vsel %vm300, %v314, 0.0
    %v324 = vsel %vm300, %v319, 0.0
    %v325 = vadd.f32 %v292, %v321
    %v326 = vadd.f32 %v293, %v322
    %v327 = vadd.f32 %v294, %v323
    %v328 = vadd.f32 %v295, %v324
    %vm329 = vcmp.eq.s32.totalorder %v67, 33
    %330 = vset.pattern.permute.xlu0 1
    %331 = vperm.xlu0 %330, %v296
    %v332 = vpop.permute.xlu0 %331
    %334 = vset.pattern.permute.xlu0 1
    %335 = vperm.xlu0 %334, %v297
    %v336 = vpop.permute.xlu0 %335
    %338 = vset.pattern.permute.xlu0 1
    %339 = vperm.xlu0 %338, %v298
    %v340 = vpop.permute.xlu0 %339
    %342 = vset.pattern.permute.xlu0 1
    %343 = vperm.xlu0 %342, %v299
    %v344 = vpop.permute.xlu0 %343
    %v346 = vsel %vm329, %v332, 0.0
    %v347 = vsel %vm329, %v336, 0.0
    %v348 = vsel %vm329, %v340, 0.0
    %v349 = vsel %vm329, %v344, 0.0
    %v350 = vadd.f32 %v325, %v346
    %v351 = vadd.f32 %v326, %v347
    %v352 = vadd.f32 %v327, %v348
    %v353 = vadd.f32 %v328, %v349
    %vm354 = vcmp.eq.s32.totalorder %v67, 34
    %355 = vset.pattern.permute.xlu0 2
    %356 = vperm.xlu0 %355, %v296
    %v357 = vpop.permute.xlu0 %356
    %359 = vset.pattern.permute.xlu0 2
    %360 = vperm.xlu0 %359, %v297
    %v361 = vpop.permute.xlu0 %360
    %363 = vset.pattern.permute.xlu0 2
    %364 = vperm.xlu0 %363, %v298
    %v365 = vpop.permute.xlu0 %364
    %367 = vset.pattern.permute.xlu0 2
    %368 = vperm.xlu0 %367, %v299
    %v369 = vpop.permute.xlu0 %368
    %v371 = vsel %vm354, %v357, 0.0
    %v372 = vsel %vm354, %v361, 0.0
    %v373 = vsel %vm354, %v365, 0.0
    %v374 = vsel %vm354, %v369, 0.0
    %v375 = vadd.f32 %v350, %v371
    %v376 = vadd.f32 %v351, %v372
    %v377 = vadd.f32 %v352, %v373
    %v378 = vadd.f32 %v353, %v374
    %vm379 = vcmp.eq.s32.totalorder %v67, 35
    %380 = vset.pattern.permute.xlu0 3
    %381 = vperm.xlu0 %380, %v296
    %v382 = vpop.permute.xlu0 %381
    %384 = vset.pattern.permute.xlu0 3
    %385 = vperm.xlu0 %384, %v297
    %v386 = vpop.permute.xlu0 %385
    %388 = vset.pattern.permute.xlu0 3
    %389 = vperm.xlu0 %388, %v298
    %v390 = vpop.permute.xlu0 %389
    %392 = vset.pattern.permute.xlu0 3
    %393 = vperm.xlu0 %392, %v299
    %v394 = vpop.permute.xlu0 %393
    %v396 = vsel %vm379, %v382, 0.0
    %v397 = vsel %vm379, %v386, 0.0
    %v398 = vsel %vm379, %v390, 0.0
    %v399 = vsel %vm379, %v394, 0.0
    %v400 = vadd.f32 %v375, %v396
    %v401 = vadd.f32 %v376, %v397
    %v402 = vadd.f32 %v377, %v398
    %v403 = vadd.f32 %v378, %v399
    %vm404 = vcmp.eq.s32.totalorder %v67, 36
    %405 = vset.pattern.permute.xlu0 4
    %406 = vperm.xlu0 %405, %v296
    %v407 = vpop.permute.xlu0 %406
    %409 = vset.pattern.permute.xlu0 4
    %410 = vperm.xlu0 %409, %v297
    %v411 = vpop.permute.xlu0 %410
    %413 = vset.pattern.permute.xlu0 4
    %414 = vperm.xlu0 %413, %v298
    %v415 = vpop.permute.xlu0 %414
    %417 = vset.pattern.permute.xlu0 4
    %418 = vperm.xlu0 %417, %v299
    %v419 = vpop.permute.xlu0 %418
    %v421 = vsel %vm404, %v407, 0.0
    %v422 = vsel %vm404, %v411, 0.0
    %v423 = vsel %vm404, %v415, 0.0
    %v424 = vsel %vm404, %v419, 0.0
    %v425 = vadd.f32 %v400, %v421
    %v426 = vadd.f32 %v401, %v422
    %v427 = vadd.f32 %v402, %v423
    %v428 = vadd.f32 %v403, %v424
    %vm429 = vcmp.eq.s32.totalorder %v67, 37
    %430 = vset.pattern.permute.xlu0 5
    %431 = vperm.xlu0 %430, %v296
    %v432 = vpop.permute.xlu0 %431
    %434 = vset.pattern.permute.xlu0 5
    %435 = vperm.xlu0 %434, %v297
    %v436 = vpop.permute.xlu0 %435
    %438 = vset.pattern.permute.xlu0 5
    %439 = vperm.xlu0 %438, %v298
    %v440 = vpop.permute.xlu0 %439
    %442 = vset.pattern.permute.xlu0 5
    %443 = vperm.xlu0 %442, %v299
    %v444 = vpop.permute.xlu0 %443
    %v446 = vsel %vm429, %v432, 0.0
    %v447 = vsel %vm429, %v436, 0.0
    %v448 = vsel %vm429, %v440, 0.0
    %v449 = vsel %vm429, %v444, 0.0
    %v450 = vadd.f32 %v425, %v446
    %v451 = vadd.f32 %v426, %v447
    %v452 = vadd.f32 %v427, %v448
    %v453 = vadd.f32 %v428, %v449
    %vm454 = vcmp.eq.s32.totalorder %v67, 38
    %455 = vset.pattern.permute.xlu0 6
    %456 = vperm.xlu0 %455, %v296
    %v457 = vpop.permute.xlu0 %456
    %459 = vset.pattern.permute.xlu0 6
    %460 = vperm.xlu0 %459, %v297
    %v461 = vpop.permute.xlu0 %460
    %463 = vset.pattern.permute.xlu0 6
    %464 = vperm.xlu0 %463, %v298
    %v465 = vpop.permute.xlu0 %464
    %467 = vset.pattern.permute.xlu0 6
    %468 = vperm.xlu0 %467, %v299
    %v469 = vpop.permute.xlu0 %468
    %v471 = vsel %vm454, %v457, 0.0
    %v472 = vsel %vm454, %v461, 0.0
    %v473 = vsel %vm454, %v465, 0.0
    %v474 = vsel %vm454, %v469, 0.0
    %v475 = vadd.f32 %v450, %v471
    %v476 = vadd.f32 %v451, %v472
    %v477 = vadd.f32 %v452, %v473
    %v478 = vadd.f32 %v453, %v474
    %vm479 = vcmp.eq.s32.totalorder %v67, 39
    %480 = vset.pattern.permute.xlu0 7
    %481 = vperm.xlu0 %480, %v296
    %v482 = vpop.permute.xlu0 %481
    %484 = vset.pattern.permute.xlu0 7
    %485 = vperm.xlu0 %484, %v297
    %v486 = vpop.permute.xlu0 %485
    %488 = vset.pattern.permute.xlu0 7
    %489 = vperm.xlu0 %488, %v298
    %v490 = vpop.permute.xlu0 %489
    %492 = vset.pattern.permute.xlu0 7
    %493 = vperm.xlu0 %492, %v299
    %v494 = vpop.permute.xlu0 %493
    %v496 = vsel %vm479, %v482, 0.0
    %v497 = vsel %vm479, %v486, 0.0
    %v498 = vsel %vm479, %v490, 0.0
    %v499 = vsel %vm479, %v494, 0.0
    %v500 = vadd.f32 %v475, %v496
    %v501 = vadd.f32 %v476, %v497
    %v502 = vadd.f32 %v477, %v498
    %v503 = vadd.f32 %v478, %v499
    %v504 = vpack.c.bf16 %v501, %v500
    %v505 = vpack.c.bf16 %v503, %v502
    %v506 = vld [vmem:[#allocation7] sm:$0xf]
    %v507 = vld [vmem:[#allocation7 + $0x4] sm:$0xf]
    %v508 = vld [vmem:[#allocation7 + $0x8] sm:$0xf]
    %v509 = vld [vmem:[#allocation7 + $0xc] sm:$0xf]
    %v510 = vld [vmem:[#allocation7 + $0x10] sm:$0xf]
    %v511 = vld [vmem:[#allocation7 + $0x14] sm:$0xf]
    %v512 = vld [vmem:[#allocation7 + $0x18] sm:$0xf]
    %v513 = vld [vmem:[#allocation7 + $0x1c] sm:$0xf]
    %v514 = vld [vmem:[#allocation7 + $0x20] sm:$0xf]
    %v515 = vld [vmem:[#allocation7 + $0x24] sm:$0xf]
    %v516 = vld [vmem:[#allocation7 + $0x28] sm:$0xf]
    %v517 = vld [vmem:[#allocation7 + $0x2c] sm:$0xf]
    %v518 = vld [vmem:[#allocation7 + $0x30] sm:$0xf]
    %v519 = vld [vmem:[#allocation7 + $0x34] sm:$0xf]
    %v520 = vld [vmem:[#allocation7 + $0x38] sm:$0xf]
    %v521 = vld [vmem:[#allocation7 + $0x3c] sm:$0xf]
    %v538 = vunpack.c.l.b16 %v506
    %v539 = vunpack.c.l.b16 %v507
    %v540 = vunpack.c.l.b16 %v508
    %v541 = vunpack.c.l.b16 %v509
    %v542 = vunpack.c.l.b16 %v510
    %v543 = vunpack.c.l.b16 %v511
    %v544 = vunpack.c.l.b16 %v512
    %v545 = vunpack.c.l.b16 %v513
    %v546 = vunpack.c.l.b16 %v514
    %v547 = vunpack.c.l.b16 %v515
    %v548 = vunpack.c.l.b16 %v516
    %v549 = vunpack.c.l.b16 %v517
    %v550 = vunpack.c.l.b16 %v518
    %v551 = vunpack.c.l.b16 %v519
    %v552 = vunpack.c.l.b16 %v520
    %v553 = vunpack.c.l.b16 %v521
    %v554 = vpack.c.b16 %v539, %v538
    %v555 = vpack.c.b16 %v541, %v540
    %v556 = vpack.c.b16 %v543, %v542
    %v557 = vpack.c.b16 %v545, %v544
    %v558 = vpack.c.b16 %v547, %v546
    %v559 = vpack.c.b16 %v549, %v548
    %v560 = vpack.c.b16 %v551, %v550
    %v561 = vpack.c.b16 %v553, %v552
    %570 = vmatprep.subr.bf16.mxu0 0
    %571 = vmatpush1.bf16.msra.mxu0 %v561
    %572 = vmatprep.subr.bf16.mxu0 0
    %573 = vmatpush1.bf16.msra.mxu0 %v560
    %574 = vmatprep.subr.bf16.mxu0 0
    %575 = vmatpush1.bf16.msra.mxu0 %v559
    %576 = vmatprep.subr.bf16.mxu0 0
    %577 = vmatpush1.bf16.msra.mxu0 %v558
    %578 = vmatprep.subr.bf16.mxu0 0
    %579 = vmatpush1.bf16.msra.mxu0 %v557
    %580 = vmatprep.subr.bf16.mxu0 0
    %581 = vmatpush1.bf16.msra.mxu0 %v556
    %582 = vmatprep.subr.bf16.mxu0 0
    %583 = vmatpush1.bf16.msra.mxu0 %v555
    %584 = vmatprep.subr.bf16.mxu0 0
    %585 = vmatpush1.bf16.msra.mxu0 %v554
    %586 = vmatprep.subr.bf16.mxu0 0
    %587 = vmatpush2.bf16.msra.mxu0 0
    %588 = vmatprep.subr.bf16.mxu0 0
    %589 = vmatpush2.bf16.msra.mxu0 0
    %590 = vmatprep.subr.bf16.mxu0 0
    %591 = vmatpush2.bf16.msra.mxu0 0
    %592 = vmatprep.subr.bf16.mxu0 0
    %593 = vmatpush2.bf16.msra.mxu0 0
    %594 = vmatprep.subr.bf16.mxu0 0
    %595 = vmatpush2.bf16.msra.mxu0 0
    %596 = vmatprep.subr.bf16.mxu0 0
    %597 = vmatpush2.bf16.msra.mxu0 0
    %598 = vmatprep.subr.bf16.mxu0 0
    %599 = vmatpush2.bf16.msra.mxu0 0
    %600 = vmatprep.subr.bf16.mxu0 0
    %601 = vmatpush2.bf16.msra.mxu0 0
    %602 = vmatprep.mubr.bf16.mxu0 0
    %603 = vmatmul.mubr.bf16.gmra.mxu0 %v504
    %v604 = vpop.f32.mrf.mxu0
    %v605 = vadd.f32 0.0, %v604
    %v606 = vpop.f32.mrf.mxu0
    %v607 = vpop.f32.mrf.mxu0
    %v608 = vadd.f32 0.0, %v607
    %v609 = vpop.f32.mrf.mxu0
    %610 = vmatprep.mubr.bf16.mxu0 0
    %611 = vmatmul.mubr.bf16.gmra.mxu0 %v505
    %v612 = vpop.f32.mrf.mxu0
    %v613 = vadd.f32 0.0, %v612
    %v614 = vpop.f32.mrf.mxu0
    %v615 = vpop.f32.mrf.mxu0
    %v616 = vadd.f32 0.0, %v615
    %v617 = vpop.f32.mrf.mxu0
    %618 = vdwg.mxu0
    %v619 = vld [vmem:[%s3] sm:$0xff]
    %v620 = vld [vmem:[%s3 + $0x8] sm:$0xff]
    %v621 = vld [vmem:[%s3 + $0x10] sm:$0xff]
    %v622 = vld [vmem:[%s3 + $0x18] sm:$0xff]
    %624 = vset.pattern.permute.xlu0 0
    %625 = vperm.xlu0 %624, %v619
    %v626 = vpop.permute.xlu0 %625
    %629 = vset.pattern.permute.xlu0 0
    %630 = vperm.xlu0 %629, %v620
    %v631 = vpop.permute.xlu0 %630
    %634 = vset.pattern.permute.xlu0 0
    %635 = vperm.xlu0 %634, %v621
    %v636 = vpop.permute.xlu0 %635
    %639 = vset.pattern.permute.xlu0 0
    %640 = vperm.xlu0 %639, %v622
    %v641 = vpop.permute.xlu0 %640
    %v643 = vmul.f32 %v626, %v605
    %v644 = vmul.f32 %v631, %v608
    %v645 = vmul.f32 %v636, %v613
    %v646 = vmul.f32 %v641, %v616
    %v647 = vld [vmem:[#allocation5] sm:$0xf]
    %v648 = vld [vmem:[#allocation5 + $0x4] sm:$0xf]
    %v649 = vld [vmem:[#allocation5 + $0x8] sm:$0xf]
    %v650 = vld [vmem:[#allocation5 + $0xc] sm:$0xf]
    %v651 = vunpack.c.l.bf16 %v647
    %v652 = vunpack.c.l.bf16 %v648
    %v653 = vunpack.c.l.bf16 %v649
    %v654 = vunpack.c.l.bf16 %v650
    %vm655 = vcmask 64512
    %v657 = vsel %vm655, %v651, 0
    %659 = vmatprep.subr.mxu0 0.0
    %660 = vmatpush1.msra.mxu0 0.0
    %661 = vmatprep.subr.mxu0 0.0
    %662 = vmatpush1.msra.mxu0 0.0
    %663 = vmatprep.subr.mxu0 0.0
    %664 = vmatpush1.msra.mxu0 0.0
    %665 = vmatprep.subr.mxu0 0.0
    %666 = vmatpush1.msra.mxu0 0.0
    %667 = vmatprep.subr.mxu0 0.0
    %668 = vmatpush1.msra.mxu0 0.0
    %669 = vmatprep.subr.mxu0 0.0
    %670 = vmatpush1.msra.mxu0 0.0
    %671 = vmatprep.subr.mxu0 0.0
    %672 = vmatpush1.msra.mxu0 0.0
    %673 = vmatprep.subr.mxu0 0.0
    %674 = vmatpush1.msra.mxu0 0.0
    %675 = vmatprep.subr.mxu0 0.0
    %676 = vmatpush1.msra.mxu0 0.0
    %677 = vmatprep.subr.mxu0 0.0
    %678 = vmatpush1.msra.mxu0 0.0
    %679 = vmatprep.subr.mxu0 0.0
    %680 = vmatpush1.msra.mxu0 0.0
    %681 = vmatprep.subr.mxu0 0.0
    %682 = vmatpush1.msra.mxu0 0.0
    %683 = vmatprep.subr.mxu0 0.0
    %684 = vmatpush1.msra.mxu0 0.0
    %685 = vmatprep.subr.mxu0 0.0
    %686 = vmatpush1.msra.mxu0 0.0
    %687 = vmatprep.subr.mxu0 0.0
    %688 = vmatpush1.msra.mxu0 0.0
    %689 = vmatprep.subr.mxu0 0.0
    %690 = vmatpush1.msra.mxu0 %v643
    %691 = vmatprep.subr.mxu0 0.0
    %692 = vmatpush2.msra.mxu0 0.0
    %693 = vmatprep.subr.mxu0 0.0
    %694 = vmatpush2.msra.mxu0 0.0
    %695 = vmatprep.subr.mxu0 0.0
    %696 = vmatpush2.msra.mxu0 0.0
    %697 = vmatprep.subr.mxu0 0.0
    %698 = vmatpush2.msra.mxu0 0.0
    %699 = vmatprep.subr.mxu0 0.0
    %700 = vmatpush2.msra.mxu0 0.0
    %701 = vmatprep.subr.mxu0 0.0
    %702 = vmatpush2.msra.mxu0 0.0
    %703 = vmatprep.subr.mxu0 0.0
    %704 = vmatpush2.msra.mxu0 0.0
    %705 = vmatprep.subr.mxu0 0.0
    %706 = vmatpush2.msra.mxu0 0.0
    %707 = vmatprep.subr.mxu0 0.0
    %708 = vmatpush2.msra.mxu0 0.0
    %709 = vmatprep.subr.mxu0 0.0
    %710 = vmatpush2.msra.mxu0 0.0
    %711 = vmatprep.subr.mxu0 0.0
    %712 = vmatpush2.msra.mxu0 0.0
    %713 = vmatprep.subr.mxu0 0.0
    %714 = vmatpush2.msra.mxu0 0.0
    %715 = vmatprep.subr.mxu0 0.0
    %716 = vmatpush2.msra.mxu0 0.0
    %717 = vmatprep.subr.mxu0 0.0
    %718 = vmatpush2.msra.mxu0 0.0
    %719 = vmatprep.subr.mxu0 0.0
    %720 = vmatpush2.msra.mxu0 0.0
    %721 = vmatprep.subr.mxu0 0.0
    %722 = vmatpush2.msra.mxu0 0.0
    %723 = vmatprep.mubr.f32.mxu0 0.0
    %724 = vmatmul.mubr.f32.gmra.mxu0 %v657
    %v725 = vpop.f32.mrf.mxu0
    %v726 = vadd.f32 0.0, %v725
    %v727 = vpop.f32.mrf.mxu0
    %728 = vdwg.mxu0
    %v730 = vsel %vm655, %v652, 0
    %732 = vmatprep.subr.mxu0 0.0
    %733 = vmatpush1.msra.mxu0 0.0
    %734 = vmatprep.subr.mxu0 0.0
    %735 = vmatpush1.msra.mxu0 0.0
    %736 = vmatprep.subr.mxu0 0.0
    %737 = vmatpush1.msra.mxu0 0.0
    %738 = vmatprep.subr.mxu0 0.0
    %739 = vmatpush1.msra.mxu0 0.0
    %740 = vmatprep.subr.mxu0 0.0
    %741 = vmatpush1.msra.mxu0 0.0
    %742 = vmatprep.subr.mxu0 0.0
    %743 = vmatpush1.msra.mxu0 0.0
    %744 = vmatprep.subr.mxu0 0.0
    %745 = vmatpush1.msra.mxu0 0.0
    %746 = vmatprep.subr.mxu0 0.0
    %747 = vmatpush1.msra.mxu0 0.0
    %748 = vmatprep.subr.mxu0 0.0
    %749 = vmatpush1.msra.mxu0 0.0
    %750 = vmatprep.subr.mxu0 0.0
    %751 = vmatpush1.msra.mxu0 0.0
    %752 = vmatprep.subr.mxu0 0.0
    %753 = vmatpush1.msra.mxu0 0.0
    %754 = vmatprep.subr.mxu0 0.0
    %755 = vmatpush1.msra.mxu0 0.0
    %756 = vmatprep.subr.mxu0 0.0
    %757 = vmatpush1.msra.mxu0 0.0
    %758 = vmatprep.subr.mxu0 0.0
    %759 = vmatpush1.msra.mxu0 0.0
    %760 = vmatprep.subr.mxu0 0.0
    %761 = vmatpush1.msra.mxu0 0.0
    %762 = vmatprep.subr.mxu0 0.0
    %763 = vmatpush1.msra.mxu0 %v644
    %764 = vmatprep.subr.mxu0 0.0
    %765 = vmatpush2.msra.mxu0 0.0
    %766 = vmatprep.subr.mxu0 0.0
    %767 = vmatpush2.msra.mxu0 0.0
    %768 = vmatprep.subr.mxu0 0.0
    %769 = vmatpush2.msra.mxu0 0.0
    %770 = vmatprep.subr.mxu0 0.0
    %771 = vmatpush2.msra.mxu0 0.0
    %772 = vmatprep.subr.mxu0 0.0
    %773 = vmatpush2.msra.mxu0 0.0
    %774 = vmatprep.subr.mxu0 0.0
    %775 = vmatpush2.msra.mxu0 0.0
    %776 = vmatprep.subr.mxu0 0.0
    %777 = vmatpush2.msra.mxu0 0.0
    %778 = vmatprep.subr.mxu0 0.0
    %779 = vmatpush2.msra.mxu0 0.0
    %780 = vmatprep.subr.mxu0 0.0
    %781 = vmatpush2.msra.mxu0 0.0
    %782 = vmatprep.subr.mxu0 0.0
    %783 = vmatpush2.msra.mxu0 0.0
    %784 = vmatprep.subr.mxu0 0.0
    %785 = vmatpush2.msra.mxu0 0.0
    %786 = vmatprep.subr.mxu0 0.0
    %787 = vmatpush2.msra.mxu0 0.0
    %788 = vmatprep.subr.mxu0 0.0
    %789 = vmatpush2.msra.mxu0 0.0
    %790 = vmatprep.subr.mxu0 0.0
    %791 = vmatpush2.msra.mxu0 0.0
    %792 = vmatprep.subr.mxu0 0.0
    %793 = vmatpush2.msra.mxu0 0.0
    %794 = vmatprep.subr.mxu0 0.0
    %795 = vmatpush2.msra.mxu0 0.0
    %796 = vmatprep.mubr.f32.mxu0 0.0
    %797 = vmatmul.mubr.f32.gmra.mxu0 %v730
    %v798 = vpop.f32.mrf.mxu0
    %v799 = vadd.f32 0.0, %v798
    %v800 = vpop.f32.mrf.mxu0
    %801 = vdwg.mxu0
    %v803 = vsel %vm655, %v653, 0
    %805 = vmatprep.subr.mxu0 0.0
    %806 = vmatpush1.msra.mxu0 0.0
    %807 = vmatprep.subr.mxu0 0.0
    %808 = vmatpush1.msra.mxu0 0.0
    %809 = vmatprep.subr.mxu0 0.0
    %810 = vmatpush1.msra.mxu0 0.0
    %811 = vmatprep.subr.mxu0 0.0
    %812 = vmatpush1.msra.mxu0 0.0
    %813 = vmatprep.subr.mxu0 0.0
    %814 = vmatpush1.msra.mxu0 0.0
    %815 = vmatprep.subr.mxu0 0.0
    %816 = vmatpush1.msra.mxu0 0.0
    %817 = vmatprep.subr.mxu0 0.0
    %818 = vmatpush1.msra.mxu0 0.0
    %819 = vmatprep.subr.mxu0 0.0
    %820 = vmatpush1.msra.mxu0 0.0
    %821 = vmatprep.subr.mxu0 0.0
    %822 = vmatpush1.msra.mxu0 0.0
    %823 = vmatprep.subr.mxu0 0.0
    %824 = vmatpush1.msra.mxu0 0.0
    %825 = vmatprep.subr.mxu0 0.0
    %826 = vmatpush1.msra.mxu0 0.0
    %827 = vmatprep.subr.mxu0 0.0
    %828 = vmatpush1.msra.mxu0 0.0
    %829 = vmatprep.subr.mxu0 0.0
    %830 = vmatpush1.msra.mxu0 0.0
    %831 = vmatprep.subr.mxu0 0.0
    %832 = vmatpush1.msra.mxu0 0.0
    %833 = vmatprep.subr.mxu0 0.0
    %834 = vmatpush1.msra.mxu0 0.0
    %835 = vmatprep.subr.mxu0 0.0
    %836 = vmatpush1.msra.mxu0 %v645
    %837 = vmatprep.subr.mxu0 0.0
    %838 = vmatpush2.msra.mxu0 0.0
    %839 = vmatprep.subr.mxu0 0.0
    %840 = vmatpush2.msra.mxu0 0.0
    %841 = vmatprep.subr.mxu0 0.0
    %842 = vmatpush2.msra.mxu0 0.0
    %843 = vmatprep.subr.mxu0 0.0
    %844 = vmatpush2.msra.mxu0 0.0
    %845 = vmatprep.subr.mxu0 0.0
    %846 = vmatpush2.msra.mxu0 0.0
    %847 = vmatprep.subr.mxu0 0.0
    %848 = vmatpush2.msra.mxu0 0.0
    %849 = vmatprep.subr.mxu0 0.0
    %850 = vmatpush2.msra.mxu0 0.0
    %851 = vmatprep.subr.mxu0 0.0
    %852 = vmatpush2.msra.mxu0 0.0
    %853 = vmatprep.subr.mxu0 0.0
    %854 = vmatpush2.msra.mxu0 0.0
    %855 = vmatprep.subr.mxu0 0.0
    %856 = vmatpush2.msra.mxu0 0.0
    %857 = vmatprep.subr.mxu0 0.0
    %858 = vmatpush2.msra.mxu0 0.0
    %859 = vmatprep.subr.mxu0 0.0
    %860 = vmatpush2.msra.mxu0 0.0
    %861 = vmatprep.subr.mxu0 0.0
    %862 = vmatpush2.msra.mxu0 0.0
    %863 = vmatprep.subr.mxu0 0.0
    %864 = vmatpush2.msra.mxu0 0.0
    %865 = vmatprep.subr.mxu0 0.0
    %866 = vmatpush2.msra.mxu0 0.0
    %867 = vmatprep.subr.mxu0 0.0
    %868 = vmatpush2.msra.mxu0 0.0
    %869 = vmatprep.mubr.f32.mxu0 0.0
    %870 = vmatmul.mubr.f32.gmra.mxu0 %v803
    %v871 = vpop.f32.mrf.mxu0
    %v872 = vadd.f32 0.0, %v871
    %v873 = vpop.f32.mrf.mxu0
    %874 = vdwg.mxu0
    %v876 = vsel %vm655, %v654, 0
    %878 = vmatprep.subr.mxu0 0.0
    %879 = vmatpush1.msra.mxu0 0.0
    %880 = vmatprep.subr.mxu0 0.0
    %881 = vmatpush1.msra.mxu0 0.0
    %882 = vmatprep.subr.mxu0 0.0
    %883 = vmatpush1.msra.mxu0 0.0
    %884 = vmatprep.subr.mxu0 0.0
    %885 = vmatpush1.msra.mxu0 0.0
    %886 = vmatprep.subr.mxu0 0.0
    %887 = vmatpush1.msra.mxu0 0.0
    %888 = vmatprep.subr.mxu0 0.0
    %889 = vmatpush1.msra.mxu0 0.0
    %890 = vmatprep.subr.mxu0 0.0
    %891 = vmatpush1.msra.mxu0 0.0
    %892 = vmatprep.subr.mxu0 0.0
    %893 = vmatpush1.msra.mxu0 0.0
    %894 = vmatprep.subr.mxu0 0.0
    %895 = vmatpush1.msra.mxu0 0.0
    %896 = vmatprep.subr.mxu0 0.0
    %897 = vmatpush1.msra.mxu0 0.0
    %898 = vmatprep.subr.mxu0 0.0
    %899 = vmatpush1.msra.mxu0 0.0
    %900 = vmatprep.subr.mxu0 0.0
    %901 = vmatpush1.msra.mxu0 0.0
    %902 = vmatprep.subr.mxu0 0.0
    %903 = vmatpush1.msra.mxu0 0.0
    %904 = vmatprep.subr.mxu0 0.0
    %905 = vmatpush1.msra.mxu0 0.0
    %906 = vmatprep.subr.mxu0 0.0
    %907 = vmatpush1.msra.mxu0 0.0
    %908 = vmatprep.subr.mxu0 0.0
    %909 = vmatpush1.msra.mxu0 %v646
    %910 = vmatprep.subr.mxu0 0.0
    %911 = vmatpush2.msra.mxu0 0.0
    %912 = vmatprep.subr.mxu0 0.0
    %913 = vmatpush2.msra.mxu0 0.0
    %914 = vmatprep.subr.mxu0 0.0
    %915 = vmatpush2.msra.mxu0 0.0
    %916 = vmatprep.subr.mxu0 0.0
    %917 = vmatpush2.msra.mxu0 0.0
    %918 = vmatprep.subr.mxu0 0.0
    %919 = vmatpush2.msra.mxu0 0.0
    %920 = vmatprep.subr.mxu0 0.0
    %921 = vmatpush2.msra.mxu0 0.0
    %922 = vmatprep.subr.mxu0 0.0
    %923 = vmatpush2.msra.mxu0 0.0
    %924 = vmatprep.subr.mxu0 0.0
    %925 = vmatpush2.msra.mxu0 0.0
    %926 = vmatprep.subr.mxu0 0.0
    %927 = vmatpush2.msra.mxu0 0.0
    %928 = vmatprep.subr.mxu0 0.0
    %929 = vmatpush2.msra.mxu0 0.0
    %930 = vmatprep.subr.mxu0 0.0
    %931 = vmatpush2.msra.mxu0 0.0
    %932 = vmatprep.subr.mxu0 0.0
    %933 = vmatpush2.msra.mxu0 0.0
    %934 = vmatprep.subr.mxu0 0.0
    %935 = vmatpush2.msra.mxu0 0.0
    %936 = vmatprep.subr.mxu0 0.0
    %937 = vmatpush2.msra.mxu0 0.0
    %938 = vmatprep.subr.mxu0 0.0
    %939 = vmatpush2.msra.mxu0 0.0
    %940 = vmatprep.subr.mxu0 0.0
    %941 = vmatpush2.msra.mxu0 0.0
    %942 = vmatprep.mubr.f32.mxu0 0.0
    %943 = vmatmul.mubr.f32.gmra.mxu0 %v876
    %v944 = vpop.f32.mrf.mxu0
    %v945 = vadd.f32 0.0, %v944
    %v946 = vpop.f32.mrf.mxu0
    %947 = vdwg.mxu0
    %v948 = vmul.f32 %v626, %v726
    %v949 = vmul.f32 %v631, %v799
    %v950 = vmul.f32 %v636, %v872
    %v951 = vmul.f32 %v641, %v945
    %v952 = vld [vmem:[%s5] sm:$0x1]
    %v954 = vlaneseq
    %v955 = vshrl.u32 %v954, 7
    %v956 = vsub.s32 0, %v955
    %v957 = vrot.slane %v952, %v956
    %v959 = vadd.f32 %v948, %v957
    %v960 = vadd.f32 %v949, %v957
    %v961 = vadd.f32 %v950, %v957
    %v962 = vadd.f32 %v951, %v957
    %vm963 = vcmp.gt.f32.partialorder %v959, 0.0
    %vm964 = vcmp.gt.f32.partialorder %v960, 0.0
    %vm965 = vcmp.gt.f32.partialorder %v961, 0.0
    %vm966 = vcmp.gt.f32.partialorder %v962, 0.0
    %v967 = vmul.f32 %v959, 0.2
    %v968 = vmul.f32 %v960, 0.2
    %v969 = vmul.f32 %v961, 0.2
    %v970 = vmul.f32 %v962, 0.2
    %v971 = vsel %vm963, %v959, %v967
    %v972 = vsel %vm964, %v960, %v968
    %v973 = vsel %vm965, %v961, %v969
    %v974 = vsel %vm966, %v962, %v970
    %vm975 = vcmask 261120
    %976 = vst.msk [vmem:[#allocation8] sm:$0xff] %vm975, %v971
    %977 = vst.msk [vmem:[#allocation8 + $0x8] sm:$0xff] %vm975, %v972
    %978 = vst.msk [vmem:[#allocation8 + $0x10] sm:$0xff] %vm975, %v973
    %979 = vst.msk [vmem:[#allocation8 + $0x18] sm:$0xff] %vm975, %v974
    // Predicated region
    $region38: #{tpu_custom_call.1} parent=1 // pred_check
      _
    $region39: #{tpu_custom_call.1} parent=1 // pred_check_branch
      %981 = sbr.rel (0) target = $region41
    $region40: #{tpu_custom_call.1} parent=1 // pred_region
      %s983 = ssub.s32 512, 512
      %984 = vsyncadd [#allocation4], %s983
      %s985 = sshll.u32 [#allocation8], 4
      %s986 = int_to_ptr.vmem [resolvable:$true] %s985
      %991 = dma.vmem_to_hbm [thread:$0]  %s986, 512, %s6, [#allocation4], 128, 128, 8
    $region41: #{tpu_custom_call.1} parent=1 // pred_fallthru
      _
    // Predicated region
    $region42: #{tpu_custom_call.1} parent=1 // pred_check
      _
    $region43: #{tpu_custom_call.1} parent=1 // pred_check_branch
      %993 = sbr.rel (0) target = $region45
    $region44: #{tpu_custom_call.1} parent=1 // pred_region
      %994 = dma.done [#allocation4], 512
    $region45: #{tpu_custom_call.1} parent=1 // pred_fallthru
      _
    %995 = vsyncpa [#allocation3], 1
    %996 = vsyncpa [#allocation6], 1
    %997 = vsyncpa [#allocation4], 1

</llo_original>
